<compile_context>
chip_gen: v6e
topology: v6e:2x2x1
jax: 0.10.0
libtpu: 0.0.40
codegen_flags: <defaults>
</compile_context>

<pallas_src>
import numpy as np
import jax
import jax.numpy as jnp
from jax import lax
from jax.experimental import pallas as pl
from jax.experimental.pallas import tpu as pltpu


def _round_up(x, m):
    return ((x + m - 1) // m) * m


def _cdiv(a, b):
    return (a + b - 1) // b


def _sublane_multiple(dtype):
    # second-minor block-dim tiling requirement by element width
    # (4B -> 8, 2B -> 16, 1B -> 32)
    return {4: 8, 2: 16, 1: 32}.get(jnp.dtype(dtype).itemsize, 8)


def balanced_bce(input_bchw, target_bchw, *, block_rows=4096):
    """BalancedBCE forward. `target` may be any numeric dtype with exact 0/1 values."""
    B = input_bchw.shape[0]
    per = int(np.prod(input_bchw.shape[1:]))  # per-sample numel

    # Flat (B, per) views in native dtypes: no padding, no host-side cast.
    x2 = input_bchw.reshape(B, per)
    t2 = target_bchw.reshape(B, per)

    # ---- tiling -------------------------------------------------------------
    block_elems = block_rows * 128
    per128 = _round_up(per, 128)
    m = max(_sublane_multiple(x2.dtype), _sublane_multiple(t2.dtype))

    bt_want = max(1, block_elems // per128)        # samples that fit one block
    if bt_want >= B:
        Bt = B                                     # full batch dim: always legal
    else:
        Bt = max(m, (bt_want // m) * m)            # multiple of sublane tiling
        Bt = min(Bt, B)                            # (== B is also legal)
    # lane extent per block: multiple of 128, ~block_elems total elements
    TL = min(per128, max(128, (block_elems // Bt) // 128 * 128))
    nb = _cdiv(B, Bt)
    ns = _cdiv(per, TL)
    col_rem = per % TL                             # 0 => no column masking needed

    # ---- kernel -------------------------------------------------------------
    def kernel(x_ref, t_ref, st_ref, sb_ref, sp_ref):
        def emit(mask_cols):
            x = x_ref[...].astype(jnp.float32)
            t = t_ref[...].astype(jnp.float32)
            # numerically-stable BCE with logits (matches PyTorch):
            #   max(x, 0) - x*t + log(1 + exp(-|x|))
            bce = jnp.maximum(x, 0.0) - x * t + jnp.log1p(jnp.exp(-jnp.abs(x)))
            if mask_cols:
                # last column block overhangs `per`: zero out-of-range lanes
                lim = per - pl.program_id(1) * TL
                col = lax.broadcasted_iota(jnp.int32, x.shape, 1)
                valid = col < lim
                t = jnp.where(valid, t, 0.0)
                bce = jnp.where(valid, bce, 0.0)
            # per-sample partials for this (b, s) block (rows past B are garbage
            # but stay row-local and are discarded in the epilogue)
            st = jnp.sum(t, axis=1, keepdims=True)          # (Bt, 1) positives
            sb = jnp.sum(bce, axis=1, keepdims=True)        # (Bt, 1) sum bce
            sp = jnp.sum(bce * t, axis=1, keepdims=True)    # (Bt, 1) bce over pos
            st_ref[...] = st.reshape(1, 1, Bt, 1)
            sb_ref[...] = sb.reshape(1, 1, Bt, 1)
            sp_ref[...] = sp.reshape(1, 1, Bt, 1)

        if col_rem == 0:
            emit(False)                      # no remainder anywhere: lean path
        elif ns == 1:
            emit(True)                       # single (masked) column block
        else:
            is_edge = pl.program_id(1) == ns - 1
            pl.when(is_edge)(lambda: emit(True))
            pl.when(jnp.logical_not(is_edge))(lambda: emit(False))

    in_spec = pl.BlockSpec((Bt, TL), lambda b, s: (b, s))
    out_spec = pl.BlockSpec((1, 1, Bt, 1), lambda b, s: (b, s, 0, 0))
    out_sds = jax.ShapeDtypeStruct((nb, ns, Bt, 1), jnp.float32)

    # explicit VMEM budget: double-buffered inputs + tiny per-block outputs + slack
    x_blk = Bt * TL * x2.dtype.itemsize
    t_blk = Bt * TL * t2.dtype.itemsize
    o_blk = _round_up(Bt, 8) * 128 * 4
    vmem_limit = int(2 * (x_blk + t_blk) + 6 * o_blk + (8 << 20))

    st_o, sb_o, sp_o = pl.pallas_call(
        kernel,
        out_shape=(out_sds, out_sds, out_sds),
        grid_spec=pltpu.PrefetchScalarGridSpec(
            num_scalar_prefetch=0,
            grid=(nb, ns),
            in_specs=[in_spec, in_spec],
            out_specs=[out_spec, out_spec, out_spec],
        ),
        compiler_params=pltpu.CompilerParams(
            dimension_semantics=("parallel", "parallel"),
            vmem_limit_bytes=vmem_limit,
        ),
    )(x2, t2)

    # ---- tiny epilogue in plain JAX: reduce partials + beta weighting --------
    numel = jnp.float32(per)
    st = jnp.sum(st_o[..., 0], axis=1).reshape(nb * Bt)[:B]   # (B,) positives
    sb = jnp.sum(sb_o[..., 0], axis=1).reshape(nb * Bt)[:B]   # (B,) sum bce
    sp = jnp.sum(sp_o[..., 0], axis=1).reshape(nb * Bt)[:B]   # (B,) bce over pos

    beta_pos = 1.0 - st / numel
    beta_neg = st / numel
    pos_total = jnp.sum(st)
    neg_total = jnp.float32(B) * numel - pos_total

    loss_pos = jnp.sum(beta_pos * sp) / pos_total
    loss_neg = jnp.sum(beta_neg * (sb - sp)) / neg_total
    return loss_pos + loss_neg


def balanced_bce_reference(input_bchw, target_bchw):
    # pure-JAX reference mirroring the PyTorch forward
    B = input_bchw.shape[0]
    x = input_bchw.reshape(B, -1).astype(jnp.float32)
    t = target_bchw.reshape(B, -1).astype(jnp.float32)
    bce = jnp.maximum(x, 0.0) - x * t + jnp.log1p(jnp.exp(-jnp.abs(x)))
    numel = x.shape[1]
    sum_t = jnp.sum(t, axis=1)
    beta_pos = 1.0 - sum_t / numel
    beta_neg = sum_t / numel
    pos_mask = (t == 1.0).astype(jnp.float32)
    neg_mask = (t == 0.0).astype(jnp.float32)
    loss_pos = jnp.sum(beta_pos[:, None] * bce * pos_mask) / jnp.sum(pos_mask)
    loss_neg = jnp.sum(beta_neg[:, None] * bce * neg_mask) / jnp.sum(neg_mask)
    return loss_pos + loss_neg


if __name__ == "__main__":
    key = jax.random.PRNGKey(0)
    k1, k2, k3, k4 = jax.random.split(key, 4)

    # Case 1: typical small dense-prediction shape; per-sample numel % 128 == 0
    # -> lean unmasked path. Targets stored as int8 (exact 0/1, minimal HBM).
    logits = jax.random.normal(k1, (2, 4, 16, 16), dtype=jnp.float32)
    target = (jax.random.uniform(k2, (2, 4, 16, 16)) > 0.5).astype(jnp.int8)
    loss = jax.block_until_ready(balanced_bce(logits, target))
    ref = balanced_bce_reference(logits, target)
    np.testing.assert_allclose(np.asarray(loss), np.asarray(ref),
                               rtol=1e-5, atol=1e-5)

    # Case 2: ragged per-sample numel (300, not a multiple of 128) -> exercises
    # the in-kernel remainder mask (no host-side padding anywhere).
    logits2 = jax.random.normal(k3, (3, 3, 10, 10), dtype=jnp.float32)
    target2 = (jax.random.uniform(k4, (3, 3, 10, 10)) > 0.3).astype(jnp.int8)
    loss2 = jax.block_until_ready(balanced_bce(logits2, target2))
    ref2 = balanced_bce_reference(logits2, target2)
    np.testing.assert_allclose(np.asarray(loss2), np.asarray(ref2),
                               rtol=1e-5, atol=1e-5)

    # Case 3: force a multi-block column grid (streaming per-block partials).
    loss3 = jax.block_until_ready(balanced_bce(logits, target, block_rows=2))
    np.testing.assert_allclose(np.asarray(loss3), np.asarray(ref),
                               rtol=1e-5, atol=1e-5)

    print("KERNEL_OK")
</pallas_src>

<mosaic_0001>
module attributes {stable_mosaic.version = 11 : i64} {
  func.func @kernel(%arg0: i32, %arg1: i32, %arg2: memref<2x1024xf32, #tpu.memory_space<vmem>>, %arg3: memref<2x1024xi8, #tpu.memory_space<vmem>>, %arg4: memref<1x1x2x1xf32, #tpu.memory_space<vmem>>, %arg5: memref<1x1x2x1xf32, #tpu.memory_space<vmem>>, %arg6: memref<1x1x2x1xf32, #tpu.memory_space<vmem>>) attributes {dimension_semantics = [#tpu.dimension_semantics<parallel>, #tpu.dimension_semantics<parallel>], iteration_bounds = array<i64: 1, 1>, scalar_prefetch = 0 : i64, scratch_operands = 0 : i64, tpu.core_type = #tpu.core_type<tc>, window_params = [{transform_indices = @transform_0, window_bounds = array<i64: 2, 1024>}, {transform_indices = @transform_1, window_bounds = array<i64: 2, 1024>}, {transform_indices = @transform_2, window_bounds = array<i64: 1, 1, 2, 1>}, {transform_indices = @transform_3, window_bounds = array<i64: 1, 1, 2, 1>}, {transform_indices = @transform_4, window_bounds = array<i64: 1, 1, 2, 1>}]} {
    %c0 = arith.constant 0 : index
    %c0_0 = arith.constant 0 : index
    %0 = vector.load %arg2[%c0, %c0_0] : memref<2x1024xf32, #tpu.memory_space<vmem>>, vector<2x1024xf32>
    %c0_1 = arith.constant 0 : index
    %c0_2 = arith.constant 0 : index
    %1 = vector.load %arg3[%c0_1, %c0_2] : memref<2x1024xi8, #tpu.memory_space<vmem>>, vector<2x1024xi8>
    %2 = arith.sitofp %1 : vector<2x1024xi8> to vector<2x1024xf32>
    %cst = arith.constant 0.000000e+00 : f32
    %3 = vector.broadcast %cst : f32 to vector<2x1024xf32>
    %4 = arith.maximumf %0, %3 : vector<2x1024xf32>
    %5 = arith.mulf %0, %2 : vector<2x1024xf32>
    %6 = arith.subf %4, %5 : vector<2x1024xf32>
    %7 = math.absf %0 : vector<2x1024xf32>
    %cst_3 = arith.constant 0.000000e+00 : f32
    %8 = vector.broadcast %cst_3 : f32 to vector<2x1024xf32>
    %9 = arith.subf %8, %7 : vector<2x1024xf32>
    %10 = math.exp %9 : vector<2x1024xf32>
    %11 = math.log1p %10 : vector<2x1024xf32>
    %12 = arith.addf %6, %11 : vector<2x1024xf32>
    %cst_4 = arith.constant dense<0.000000e+00> : vector<2xf32>
    %13 = vector.multi_reduction <add>, %2, %cst_4 [1] : vector<2x1024xf32> to vector<2xf32>
    %14 = vector.shape_cast %13 : vector<2xf32> to vector<2x1xf32>
    %cst_5 = arith.constant dense<0.000000e+00> : vector<2xf32>
    %15 = vector.multi_reduction <add>, %12, %cst_5 [1] : vector<2x1024xf32> to vector<2xf32>
    %16 = vector.shape_cast %15 : vector<2xf32> to vector<2x1xf32>
    %17 = arith.mulf %12, %2 : vector<2x1024xf32>
    %cst_6 = arith.constant dense<0.000000e+00> : vector<2xf32>
    %18 = vector.multi_reduction <add>, %17, %cst_6 [1] : vector<2x1024xf32> to vector<2xf32>
    %19 = vector.shape_cast %18 : vector<2xf32> to vector<2x1xf32>
    %20 = vector.shape_cast %14 : vector<2x1xf32> to vector<1x1x2x1xf32>
    %c0_7 = arith.constant 0 : index
    %c0_8 = arith.constant 0 : index
    %c0_9 = arith.constant 0 : index
    %c0_10 = arith.constant 0 : index
    %21 = vector.load %arg4[%c0_7, %c0_8, %c0_9, %c0_10] : memref<1x1x2x1xf32, #tpu.memory_space<vmem>>, vector<1x1x2x1xf32>
    tpu.vector_store %arg4[%c0_7, %c0_8, %c0_9, %c0_10], %20 {strides = array<i32>} : memref<1x1x2x1xf32, #tpu.memory_space<vmem>>, vector<1x1x2x1xf32>,
    %22 = vector.shape_cast %16 : vector<2x1xf32> to vector<1x1x2x1xf32>
    %c0_11 = arith.constant 0 : index
    %c0_12 = arith.constant 0 : index
    %c0_13 = arith.constant 0 : index
    %c0_14 = arith.constant 0 : index
    %23 = vector.load %arg5[%c0_11, %c0_12, %c0_13, %c0_14] : memref<1x1x2x1xf32, #tpu.memory_space<vmem>>, vector<1x1x2x1xf32>
    tpu.vector_store %arg5[%c0_11, %c0_12, %c0_13, %c0_14], %22 {strides = array<i32>} : memref<1x1x2x1xf32, #tpu.memory_space<vmem>>, vector<1x1x2x1xf32>,
    %24 = vector.shape_cast %19 : vector<2x1xf32> to vector<1x1x2x1xf32>
    %c0_15 = arith.constant 0 : index
    %c0_16 = arith.constant 0 : index
    %c0_17 = arith.constant 0 : index
    %c0_18 = arith.constant 0 : index
    %25 = vector.load %arg6[%c0_15, %c0_16, %c0_17, %c0_18] : memref<1x1x2x1xf32, #tpu.memory_space<vmem>>, vector<1x1x2x1xf32>
    tpu.vector_store %arg6[%c0_15, %c0_16, %c0_17, %c0_18], %24 {strides = array<i32>} : memref<1x1x2x1xf32, #tpu.memory_space<vmem>>, vector<1x1x2x1xf32>,
    return
  }
  func.func @transform_0(%arg0: i32, %arg1: i32) -> (i32, i32) {
    %c0_i32 = arith.constant 0 : i32
    return %arg0, %arg1 : i32, i32
  }
  func.func @transform_1(%arg0: i32, %arg1: i32) -> (i32, i32) {
    %c0_i32 = arith.constant 0 : i32
    return %arg0, %arg1 : i32, i32
  }
  func.func @transform_2(%arg0: i32, %arg1: i32) -> (i32, i32, i32, i32) {
    %c0_i32 = arith.constant 0 : i32
    %c0_i32_0 = arith.constant 0 : i32
    %c0_i32_1 = arith.constant 0 : i32
    return %arg0, %arg1, %c0_i32, %c0_i32_0 : i32, i32, i32, i32
  }
  func.func @transform_3(%arg0: i32, %arg1: i32) -> (i32, i32, i32, i32) {
    %c0_i32 = arith.constant 0 : i32
    %c0_i32_0 = arith.constant 0 : i32
    %c0_i32_1 = arith.constant 0 : i32
    return %arg0, %arg1, %c0_i32, %c0_i32_0 : i32, i32, i32, i32
  }
  func.func @transform_4(%arg0: i32, %arg1: i32) -> (i32, i32, i32, i32) {
    %c0_i32 = arith.constant 0 : i32
    %c0_i32_0 = arith.constant 0 : i32
    %c0_i32_1 = arith.constant 0 : i32
    return %arg0, %arg1, %c0_i32, %c0_i32_0 : i32, i32, i32, i32
  }
}

</mosaic_0001>

<llo_original>
// kernel: tpu_custom_call.1
$region0: #{tpu_custom_call.1}
  #allocation0 [shape = 'u32[]', space=smem, size = 0x4, offset = 0x4, fixed_abs, tag = 'smem constant byte address 0x4 - core index']
  #allocation1 [shape = 'u32[144,128]{1,0:T(1,128)}', space=vmem, size = 0x12000, scoped, tag = 'internal scratch']
  %s0 = inlined_call_operand.hbm [shape: f32[2,1024], index: 0, kind: input, shape index: {}]
  %s1 = inlined_call_operand.hbm [shape: s8[2,1024], index: 1, kind: input, shape index: {}]
  %s2 = inlined_call_operand.vmem [shape: f32[1,1,2,1], index: 2, kind: output, shape index: {0}]
  %s3 = inlined_call_operand.vmem [shape: f32[1,1,2,1], index: 3, kind: output, shape index: {1}]
  %s4 = inlined_call_operand.vmem [shape: f32[1,1,2,1], index: 4, kind: output, shape index: {2}]
  %5 = xla_tuple %s2, %s3, %s4
  %s6 = sld [smem:[#allocation0]]
  $region42: #{tpu_custom_call.1} parent=0
    _
  %s8 = ssub.s32 1, %s6
  %s9 = scalar_select 0, %s8, %s6
  $region1: #{tpu_custom_call.1} parent=0
    #allocation2 [shape = 'u8[8192]{0}', space=vmem, size = 0x2000, scoped, tag = 'input window, operand 0, single buffered']
    #allocation3 [shape = 's32[1]{0}', space=sflag, size = 0x4, scoped, tag = 'scoped memory for tpu_custom_call.1']
    #allocation4 [shape = 'u8[4096]{0}', space=vmem, size = 0x1000, scoped, tag = 'input window, operand 1, single buffered']
    #allocation5 [shape = 's32[1]{0}', space=sflag, size = 0x4, scoped, tag = 'scoped memory for tpu_custom_call.1']
    %10 = vsyncpa [#allocation3], 0
    %11 = vsyncpa [#allocation5], 0
    // Predicated region
    $region2: #{tpu_custom_call.1} parent=1 // pred_check
      _
    $region3: #{tpu_custom_call.1} parent=1 // pred_check_branch
      %13 = sbr.rel (0) target = $region5
    $region4: #{tpu_custom_call.1} parent=1 // pred_region
      %s15 = ssub.s32 256, 256
      %16 = vsyncadd [#allocation3], %s15
      %s18 = sshll.u32 [#allocation2], 4
      %s19 = int_to_ptr.vmem [resolvable:$true] %s18
      %21 = dma.hbm_to_vmem [thread:$0]  %s0, 256, %s19, [#allocation3]
    $region5: #{tpu_custom_call.1} parent=1 // pred_fallthru
      _
    // Predicated region
    $region6: #{tpu_custom_call.1} parent=1 // pred_check
      _
    $region7: #{tpu_custom_call.1} parent=1 // pred_check_branch
      %23 = sbr.rel (0) target = $region9
    $region8: #{tpu_custom_call.1} parent=1 // pred_region
      %s25 = ssub.s32 128, 128
      %26 = vsyncadd [#allocation5], %s25
      %s28 = sshll.u32 [#allocation4], 4
      %s29 = int_to_ptr.vmem [resolvable:$true] %s28
      %31 = dma.hbm_to_vmem [thread:$0]  %s1, 128, %s29, [#allocation5]
    $region9: #{tpu_custom_call.1} parent=1 // pred_fallthru
      _
    // Predicated region
    $region10: #{tpu_custom_call.1} parent=1 // pred_check
      _
    $region11: #{tpu_custom_call.1} parent=1 // pred_check_branch
      %33 = sbr.rel (0) target = $region13
    $region12: #{tpu_custom_call.1} parent=1 // pred_region
      %34 = dma.done [#allocation3], 256
    $region13: #{tpu_custom_call.1} parent=1 // pred_fallthru
      _
    // Predicated region
    $region14: #{tpu_custom_call.1} parent=1 // pred_check
      _
    $region15: #{tpu_custom_call.1} parent=1 // pred_check_branch
      %36 = sbr.rel (0) target = $region17
    $region16: #{tpu_custom_call.1} parent=1 // pred_region
      %37 = dma.done [#allocation5], 128
    $region17: #{tpu_custom_call.1} parent=1 // pred_fallthru
      _
    %v38 = vld [vmem:[#allocation2] sm:$0xff]
    %v39 = vld [vmem:[#allocation2 + $0x8] sm:$0xff]
    %v40 = vld [vmem:[#allocation4] sm:$0xff]
    %v41 = vunpack.c.0.s8 %v40
    %v42 = vunpack.c.1.s8 %v40
    %v43 = vunpack.c.2.s8 %v40
    %v44 = vunpack.c.3.s8 %v40
    %v45 = vcvt.s32.f32 %v41
    %v46 = vcvt.s32.f32 %v42
    %v47 = vcvt.s32.f32 %v43
    %v48 = vcvt.s32.f32 %v44
    %v49 = vmax.f32 %v38, 0.0
    %v50 = vmax.f32 %v39, 0.0
    %v56 = vunpack.c.l.s4 1983009808
    %v57 = vunpack.c.0.s8 %v56
    %v58 = vlaneseq
    %v59 = vshrl.u32 %v58, 7
    %v60 = vsub.s32 %v57, %v59
    %v61 = vrot.slane %v45, %v60
    %v63 = vunpack.c.l.s4 1983009808
    %v64 = vunpack.c.0.s8 %v63
    %v65 = vlaneseq
    %v66 = vshrl.u32 %v65, 7
    %v67 = vsub.s32 %v64, %v66
    %v68 = vrot.slane %v46, %v67
    %v69 = vcombine.low %v61, %v68
    %v71 = vunpack.c.l.s4 1983009808
    %v72 = vunpack.c.0.s8 %v71
    %v73 = vlaneseq
    %v74 = vshrl.u32 %v73, 7
    %v75 = vsub.s32 %v72, %v74
    %v76 = vrot.slane %v47, %v75
    %v78 = vunpack.c.l.s4 1983009808
    %v79 = vunpack.c.0.s8 %v78
    %v80 = vlaneseq
    %v81 = vshrl.u32 %v80, 7
    %v82 = vsub.s32 %v79, %v81
    %v83 = vrot.slane %v48, %v82
    %v84 = vcombine.low %v76, %v83
    %v87 = vmul.f32 %v38, %v69
    %v88 = vmul.f32 %v39, %v84
    %v89 = vsub.f32 %v49, %v87
    %v90 = vsub.f32 %v50, %v88
    %v91 = vand.u32 2147483647, %v38
    %v92 = vand.u32 2147483647, %v39
    %v93 = vsub.f32 0.0, %v91
    %v94 = vsub.f32 0.0, %v92
    %v95 = vmul.f32 %v93, 1.442695
    %v96 = vpow.pop %v95
    %v97 = vmul.f32 %v94, 1.442695
    %v98 = vpow.pop %v97
    %v99 = vadd.f32 %v96, 1.0
    %v100 = vlog2.pop %v99
    %v101 = vmul.f32 %v100, 0.6931472
    %v102 = vmul.f32 -0.5, %v96
    %v103 = vadd.f32 %v102, 1.0
    %v104 = vmul.f32 %v103, %v96
    %v105 = vand.u32 2147483647, %v96
    %vm106 = vcmp.lt.f32.partialorder %v105, 0.0004427343
    %v107 = vsel %vm106, %v104, %v101
    %v108 = vadd.f32 %v98, 1.0
    %v109 = vlog2.pop %v108
    %v110 = vmul.f32 %v109, 0.6931472
    %v111 = vmul.f32 -0.5, %v98
    %v112 = vadd.f32 %v111, 1.0
    %v113 = vmul.f32 %v112, %v98
    %v114 = vand.u32 2147483647, %v98
    %vm115 = vcmp.lt.f32.partialorder %v114, 0.0004427343
    %v116 = vsel %vm115, %v113, %v110
    %v117 = vadd.f32 %v89, %v107
    %v118 = vadd.f32 %v90, %v116
    %v119 = vcombine.high %v45, %v45
    %v120 = vcombine.high %v46, %v46
    %v121 = vcombine.high %v47, %v47
    %v122 = vcombine.high %v48, %v48
    %vm127 = vcmask 1041408
    %v128 = vsel %vm127, %v45, 0.0
    %v129 = vsel %vm127, %v119, 0.0
    %v130 = vadd.f32 %v128, %v129
    %v131 = vsel %vm127, %v46, 0.0
    %v132 = vadd.f32 %v130, %v131
    %v133 = vsel %vm127, %v120, 0.0
    %v134 = vadd.f32 %v132, %v133
    %v135 = vsel %vm127, %v47, 0.0
    %v136 = vadd.f32 %v134, %v135
    %v137 = vsel %vm127, %v121, 0.0
    %v138 = vadd.f32 %v136, %v137
    %v139 = vsel %vm127, %v48, 0.0
    %v140 = vadd.f32 %v138, %v139
    %v141 = vsel %vm127, %v122, 0.0
    %v142 = vadd.f32 %v140, %v141
    %143 = vadd.xlane.f32.xlu0 %v142
    %v144 = vpop.xlane.xlu0 %143
    %v147 = vcombine.high %v117, %v117
    %v149 = vunpack.c.l.s4 1983009808
    %v150 = vunpack.c.0.s8 %v149
    %v151 = vlaneseq
    %v152 = vshrl.u32 %v151, 7
    %v153 = vsub.s32 %v150, %v152
    %v154 = vrot.slane %v117, %v153
    %v156 = vunpack.c.l.s4 1983009808
    %v157 = vunpack.c.0.s8 %v156
    %v158 = vlaneseq
    %v159 = vshrl.u32 %v158, 7
    %v160 = vsub.s32 %v157, %v159
    %v161 = vrot.slane %v147, %v160
    %v162 = vcombine.high %v154, %v154
    %v163 = vcombine.high %v161, %v161
    %v164 = vcombine.high %v118, %v118
    %v166 = vunpack.c.l.s4 1983009808
    %v167 = vunpack.c.0.s8 %v166
    %v168 = vlaneseq
    %v169 = vshrl.u32 %v168, 7
    %v170 = vsub.s32 %v167, %v169
    %v171 = vrot.slane %v118, %v170
    %v173 = vunpack.c.l.s4 1983009808
    %v174 = vunpack.c.0.s8 %v173
    %v175 = vlaneseq
    %v176 = vshrl.u32 %v175, 7
    %v177 = vsub.s32 %v174, %v176
    %v178 = vrot.slane %v164, %v177
    %v179 = vcombine.high %v171, %v171
    %v180 = vcombine.high %v178, %v178
    %v189 = vsel %vm127, %v154, 0.0
    %v190 = vsel %vm127, %v162, 0.0
    %v191 = vadd.f32 %v189, %v190
    %v192 = vsel %vm127, %v161, 0.0
    %v193 = vadd.f32 %v191, %v192
    %v194 = vsel %vm127, %v163, 0.0
    %v195 = vadd.f32 %v193, %v194
    %v196 = vsel %vm127, %v171, 0.0
    %v197 = vadd.f32 %v195, %v196
    %v198 = vsel %vm127, %v179, 0.0
    %v199 = vadd.f32 %v197, %v198
    %v200 = vsel %vm127, %v178, 0.0
    %v201 = vadd.f32 %v199, %v200
    %v202 = vsel %vm127, %v180, 0.0
    %v203 = vadd.f32 %v201, %v202
    %204 = vadd.xlane.f32.xlu0 %v203
    %v205 = vpop.xlane.xlu0 %204
    %v206 = vmul.f32 %v117, %v69
    %v207 = vmul.f32 %v118, %v84
    %v210 = vcombine.high %v206, %v206
    %v212 = vunpack.c.l.s4 1983009808
    %v213 = vunpack.c.0.s8 %v212
    %v214 = vlaneseq
    %v215 = vshrl.u32 %v214, 7
    %v216 = vsub.s32 %v213, %v215
    %v217 = vrot.slane %v206, %v216
    %v219 = vunpack.c.l.s4 1983009808
    %v220 = vunpack.c.0.s8 %v219
    %v221 = vlaneseq
    %v222 = vshrl.u32 %v221, 7
    %v223 = vsub.s32 %v220, %v222
    %v224 = vrot.slane %v210, %v223
    %v225 = vcombine.high %v217, %v217
    %v226 = vcombine.high %v224, %v224
    %v227 = vcombine.high %v207, %v207
    %v229 = vunpack.c.l.s4 1983009808
    %v230 = vunpack.c.0.s8 %v229
    %v231 = vlaneseq
    %v232 = vshrl.u32 %v231, 7
    %v233 = vsub.s32 %v230, %v232
    %v234 = vrot.slane %v207, %v233
    %v236 = vunpack.c.l.s4 1983009808
    %v237 = vunpack.c.0.s8 %v236
    %v238 = vlaneseq
    %v239 = vshrl.u32 %v238, 7
    %v240 = vsub.s32 %v237, %v239
    %v241 = vrot.slane %v227, %v240
    %v242 = vcombine.high %v234, %v234
    %v243 = vcombine.high %v241, %v241
    %v252 = vsel %vm127, %v217, 0.0
    %v253 = vsel %vm127, %v225, 0.0
    %v254 = vadd.f32 %v252, %v253
    %v255 = vsel %vm127, %v224, 0.0
    %v256 = vadd.f32 %v254, %v255
    %v257 = vsel %vm127, %v226, 0.0
    %v258 = vadd.f32 %v256, %v257
    %v259 = vsel %vm127, %v234, 0.0
    %v260 = vadd.f32 %v258, %v259
    %v261 = vsel %vm127, %v242, 0.0
    %v262 = vadd.f32 %v260, %v261
    %v263 = vsel %vm127, %v241, 0.0
    %v264 = vadd.f32 %v262, %v263
    %v265 = vsel %vm127, %v243, 0.0
    %v266 = vadd.f32 %v264, %v265
    %267 = vadd.xlane.f32.xlu0 %v266
    %v268 = vpop.xlane.xlu0 %267
    %vm269 = vcmask 1024
    %270 = vst.msk [vmem:[%s2] sm:$0x3] %vm269, %v144
    %271 = vst.msk [vmem:[%s3] sm:$0x3] %vm269, %v205
    %272 = vst.msk [vmem:[%s4] sm:$0x3] %vm269, %v268
    // Predicated region
    $region18: #{tpu_custom_call.1} parent=1 // pred_check
      _
    $region19: #{tpu_custom_call.1} parent=1 // pred_check_branch
      %274 = sbr.rel (0) target = $region21
    $region20: #{tpu_custom_call.1} parent=1 // pred_region
      _
    $region21: #{tpu_custom_call.1} parent=1 // pred_fallthru
      _
    // Predicated region
    $region22: #{tpu_custom_call.1} parent=1 // pred_check
      _
    $region23: #{tpu_custom_call.1} parent=1 // pred_check_branch
      %276 = sbr.rel (0) target = $region25
    $region24: #{tpu_custom_call.1} parent=1 // pred_region
      _
    $region25: #{tpu_custom_call.1} parent=1 // pred_fallthru
      _
    // Predicated region
    $region26: #{tpu_custom_call.1} parent=1 // pred_check
      _
    $region27: #{tpu_custom_call.1} parent=1 // pred_check_branch
      %278 = sbr.rel (0) target = $region29
    $region28: #{tpu_custom_call.1} parent=1 // pred_region
      _
    $region29: #{tpu_custom_call.1} parent=1 // pred_fallthru
      _
    // Predicated region
    $region30: #{tpu_custom_call.1} parent=1 // pred_check
      _
    $region31: #{tpu_custom_call.1} parent=1 // pred_check_branch
      %280 = sbr.rel (0) target = $region33
    $region32: #{tpu_custom_call.1} parent=1 // pred_region
      _
    $region33: #{tpu_custom_call.1} parent=1 // pred_fallthru
      _
    // Predicated region
    $region34: #{tpu_custom_call.1} parent=1 // pred_check
      _
    $region35: #{tpu_custom_call.1} parent=1 // pred_check_branch
      %282 = sbr.rel (0) target = $region37
    $region36: #{tpu_custom_call.1} parent=1 // pred_region
      _
    $region37: #{tpu_custom_call.1} parent=1 // pred_fallthru
      _
    // Predicated region
    $region38: #{tpu_custom_call.1} parent=1 // pred_check
      _
    $region39: #{tpu_custom_call.1} parent=1 // pred_check_branch
      %284 = sbr.rel (0) target = $region41
    $region40: #{tpu_custom_call.1} parent=1 // pred_region
      _
    $region41: #{tpu_custom_call.1} parent=1 // pred_fallthru
      _
    %285 = vsyncpa [#allocation3], 1
    %286 = vsyncpa [#allocation5], 1

</llo_original>
